<compile_context>
chip_gen: v7x
topology: tpu7x:2x2x1
jax: 0.10.0
libtpu: 0.0.40
codegen_flags: <defaults>
</compile_context>

<pallas_src>
import jax
import jax.numpy as jnp
from jax.experimental import pallas as pl
from jax.experimental.pallas import tpu as pltpu


# ---------------------------------------------------------------------------
# Kernel 1: fused projection.  H = x @ Wh^T + bh,  G = x @ Wg^T + bg.
# Grid = (M/tm, D_out/tn, D_in/tk); K axis innermost ("arbitrary") with f32
# accumulators held in VMEM scratch across it.
# ---------------------------------------------------------------------------
def _proj_kernel(x_ref, wh_ref, wg_ref, bh_ref, bg_ref, h_ref, g_ref,
                 acc_h, acc_g):
    k = pl.program_id(2)

    @pl.when(k == 0)
    def _():
        acc_h[...] = jnp.zeros_like(acc_h)
        acc_g[...] = jnp.zeros_like(acc_g)

    # x_tile (tm, tk) contracted with w_tile (tn, tk) on the shared D_in axis:
    # a trans-B matmul the MXU consumes without a materialized transpose
    # (same pattern as flash-attention q @ k^T).
    acc_h[...] += jax.lax.dot_general(
        x_ref[...], wh_ref[...],
        dimension_numbers=(((1,), (1,)), ((), ())),
        preferred_element_type=jnp.float32)
    acc_g[...] += jax.lax.dot_general(
        x_ref[...], wg_ref[...],
        dimension_numbers=(((1,), (1,)), ((), ())),
        preferred_element_type=jnp.float32)

    @pl.when(k == pl.num_programs(2) - 1)
    def _():
        h_ref[...] = (acc_h[...] + bh_ref[...]).astype(h_ref.dtype)
        g_ref[...] = (acc_g[...] + bg_ref[...]).astype(g_ref.dtype)


# ---------------------------------------------------------------------------
# Kernel 2: batched out[b] = H[b] @ G[b]^T over (S, S) output tiles.
# No weights, no projection work: just one MXU contraction per tile.
# ---------------------------------------------------------------------------
def _outer_kernel(h_ref, g_ref, o_ref):
    out = jax.lax.dot_general(
        h_ref[0], g_ref[0],
        dimension_numbers=(((1,), (1,)), ((), ())),
        preferred_element_type=jnp.float32)
    o_ref[0] = out.astype(o_ref.dtype)


def _pick_tile(dim, preferred):
    """Largest lane-friendly tile <= preferred that divides `dim`, else dim."""
    if dim <= preferred:
        return dim
    for t in sorted({preferred, 512, 256, 128}, reverse=True):
        if t <= preferred and dim % t == 0:
            return t
    return dim  # fall back to a single full-size block


def _vmem_budget():
    """(physical VMEM bytes, scoped-VMEM cap leaving Mosaic headroom)."""
    try:
        phys = int(pltpu.get_tpu_info().vmem_capacity_bytes)
    except Exception:
        phys = 128 * 1024 * 1024
    # ~54 MiB cap on a 64 MiB v7x, ~108 MiB on 128 MiB v5e/v6e.
    return phys, int(phys * 0.85)


def geglu_forward(x, weight, bias, *, block_m=None, block_n=None, block_k=512,
                  compute_dtype=jnp.bfloat16, out_dtype=None):
    """
    x:      (B, S, D_in)
    weight: (2*D_out, D_in)   -- PyTorch nn.Linear layout (no transpose needed)
    bias:   (2*D_out,)
    returns (B, S, S) in out_dtype (defaults to x.dtype)
    """
    B, S, D_in = x.shape
    two_dout, D_in_w = weight.shape
    assert D_in_w == D_in and two_dout % 2 == 0
    D_out = two_dout // 2
    out_dtype = x.dtype if out_dtype is None else out_dtype

    phys_vmem, vmem_cap = _vmem_budget()
    # Bigger output tiles on 128 MiB parts (v5e/v6e), 256 on 64 MiB v7x.
    pref = 512 if phys_vmem >= (100 << 20) else 256
    block_m = pref if block_m is None else block_m
    block_n = pref if block_n is None else block_n

    M = B * S
    cbytes = jnp.dtype(compute_dtype).itemsize
    obytes = jnp.dtype(out_dtype).itemsize

    # ------------------------- projection kernel ---------------------------
    tm_p = _pick_tile(M, block_m)
    tn_p = _pick_tile(D_out, min(block_n, 256))
    tk_p = _pick_tile(D_in, block_k)
    assert D_out % tn_p == 0
    assert tn_p % 8 == 0, "D_out (or its chosen tile) must be sublane-aligned"

    # Single cast pass over x / weight; no transposes or weight slices.
    # TODO(synk): cache the bf16 weight cast across calls (weights are static).
    xc = x.reshape(M, D_in).astype(compute_dtype)
    wc = weight.astype(compute_dtype)                       # (2*D_out, D_in)
    bh = bias[:D_out].astype(jnp.float32).reshape(1, D_out)
    bg = bias[D_out:].astype(jnp.float32).reshape(1, D_out)

    g_off = D_out // tn_p           # block-row offset of the gate half in wc
    proj_grid = (M // tm_p, D_out // tn_p, D_in // tk_p)

    proj_vmem = (2 * (tm_p * tk_p + 2 * tn_p * tk_p) * cbytes   # x, wh, wg (2-buf)
                 + 2 * 2 * tm_p * tn_p * cbytes                  # H, G outputs (2-buf)
                 + 2 * tm_p * tn_p * 4                           # f32 accumulators
                 + 4 * tn_p * 4)                                 # bias blocks
    proj_cost = pl.CostEstimate(
        flops=2 * M * D_in * 2 * D_out,
        transcendentals=0,
        bytes_accessed=int((D_out // tn_p) * M * D_in * cbytes
                           + (M // tm_p) * 2 * D_out * D_in * cbytes
                           + 2 * D_out * 4
                           + 2 * M * D_out * cbytes))

    h, g = pl.pallas_call(
        _proj_kernel,
        out_shape=(jax.ShapeDtypeStruct((M, D_out), compute_dtype),
                   jax.ShapeDtypeStruct((M, D_out), compute_dtype)),
        grid_spec=pltpu.PrefetchScalarGridSpec(
            num_scalar_prefetch=0,
            grid=proj_grid,
            in_specs=[
                pl.BlockSpec((tm_p, tk_p), lambda i, j, k: (i, k)),
                pl.BlockSpec((tn_p, tk_p), lambda i, j, k: (j, k)),
                pl.BlockSpec((tn_p, tk_p), lambda i, j, k: (g_off + j, k)),
                pl.BlockSpec((1, tn_p), lambda i, j, k: (0, j)),
                pl.BlockSpec((1, tn_p), lambda i, j, k: (0, j)),
            ],
            out_specs=[pl.BlockSpec((tm_p, tn_p), lambda i, j, k: (i, j)),
                       pl.BlockSpec((tm_p, tn_p), lambda i, j, k: (i, j))],
            scratch_shapes=[pltpu.VMEM((tm_p, tn_p), jnp.float32),
                            pltpu.VMEM((tm_p, tn_p), jnp.float32)],
        ),
        compiler_params=pltpu.CompilerParams(
            dimension_semantics=("parallel", "parallel", "arbitrary"),
            vmem_limit_bytes=int(min(vmem_cap, max(32 << 20, 2 * proj_vmem))),
        ),
        cost_estimate=proj_cost,
    )(xc, wc, wc, bh, bg)

    # --------------------------- outer product ------------------------------
    h3 = h.reshape(B, S, D_out)
    g3 = g.reshape(B, S, D_out)

    tm = _pick_tile(S, block_m)
    tn = _pick_tile(S, block_n)

    outer_vmem = 2 * (tm + tn) * D_out * cbytes + 2 * tm * tn * obytes
    outer_cost = pl.CostEstimate(
        flops=2 * B * S * S * D_out,
        transcendentals=0,
        bytes_accessed=int(B * S * D_out * cbytes
                           + (S // tm) * B * S * D_out * cbytes
                           + B * S * S * obytes))

    out = pl.pallas_call(
        _outer_kernel,
        out_shape=jax.ShapeDtypeStruct((B, S, S), out_dtype),
        grid_spec=pltpu.PrefetchScalarGridSpec(
            num_scalar_prefetch=0,
            grid=(B, S // tm, S // tn),
            in_specs=[
                pl.BlockSpec((1, tm, D_out), lambda b, i, j: (b, i, 0)),
                pl.BlockSpec((1, tn, D_out), lambda b, i, j: (b, j, 0)),
            ],
            out_specs=pl.BlockSpec((1, tm, tn), lambda b, i, j: (b, i, j)),
        ),
        compiler_params=pltpu.CompilerParams(
            dimension_semantics=("parallel", "parallel", "arbitrary"),
            vmem_limit_bytes=int(min(vmem_cap, max(32 << 20, 2 * outer_vmem))),
        ),
        cost_estimate=outer_cost,
    )(h3, g3)
    return out


def geglu_reference(x, weight, bias, compute_dtype=jnp.bfloat16):
    """Pure-JAX reference with the same mixed-precision recipe as the kernels."""
    d_out = weight.shape[0] // 2
    xc = x.astype(compute_dtype)
    wc = weight.astype(compute_dtype)
    y = jax.lax.dot_general(xc, wc,
                            dimension_numbers=(((2,), (1,)), ((), ())),
                            preferred_element_type=jnp.float32)
    y = y + bias.astype(jnp.float32)
    h = y[..., :d_out].astype(compute_dtype)
    g = y[..., d_out:].astype(compute_dtype)
    out = jax.lax.dot_general(h, g,
                              dimension_numbers=(((2,), (2,)), ((0,), (0,))),
                              preferred_element_type=jnp.float32)
    return out.astype(x.dtype)


if __name__ == "__main__":
    # Small but non-trivial: exercises the K-tiled projection (2 k-steps,
    # 2 j-steps, gate block offset) and the (B, S/tm, S/tn) = (2, 2, 2) outer grid.
    B, S, dim_in, dim_out = 2, 256, 256, 256

    key = jax.random.PRNGKey(0)
    kx, kw, kb = jax.random.split(key, 3)

    x = jax.random.normal(kx, (B, S, dim_in), dtype=jnp.float32)
    bound = 1.0 / (dim_in ** 0.5)       # nn.Linear default init range
    weight = jax.random.uniform(kw, (2 * dim_out, dim_in),
                                minval=-bound, maxval=bound, dtype=jnp.float32)
    bias = jax.random.uniform(kb, (2 * dim_out,),
                              minval=-bound, maxval=bound, dtype=jnp.float32)

    out = geglu_forward(x, weight, bias, block_m=128, block_n=128, block_k=128)
    out = jax.block_until_ready(out)

    ref = geglu_reference(x, weight, bias)
    assert out.shape == (B, S, S)
    assert out.dtype == x.dtype
    assert jnp.allclose(out, ref, atol=2e-2, rtol=2e-2), \
        float(jnp.max(jnp.abs(out - ref)))

    print("KERNEL_OK")
</pallas_src>

<mosaic_0001>
module attributes {stable_mosaic.version = 11 : i64} {
  func.func @_proj_kernel(%arg0: i32, %arg1: i32, %arg2: i32, %arg3: memref<128x128xbf16, #tpu.memory_space<vmem>>, %arg4: memref<128x128xbf16, #tpu.memory_space<vmem>>, %arg5: memref<128x128xbf16, #tpu.memory_space<vmem>>, %arg6: memref<1x128xf32, #tpu.memory_space<vmem>>, %arg7: memref<1x128xf32, #tpu.memory_space<vmem>>, %arg8: memref<128x128xbf16, #tpu.memory_space<vmem>>, %arg9: memref<128x128xbf16, #tpu.memory_space<vmem>>, %arg10: memref<128x128xf32, #tpu.memory_space<vmem>>, %arg11: memref<128x128xf32, #tpu.memory_space<vmem>>) attributes {dimension_semantics = [#tpu.dimension_semantics<parallel>, #tpu.dimension_semantics<parallel>, #tpu.dimension_semantics<arbitrary>], iteration_bounds = array<i64: 4, 2, 2>, scalar_prefetch = 0 : i64, scratch_operands = 2 : i64, tpu.core_type = #tpu.core_type<tc>, window_params = [{transform_indices = @transform_0, window_bounds = array<i64: 128, 128>}, {transform_indices = @transform_1, window_bounds = array<i64: 128, 128>}, {transform_indices = @transform_2, window_bounds = array<i64: 128, 128>}, {transform_indices = @transform_3, window_bounds = array<i64: 1, 128>}, {transform_indices = @transform_4, window_bounds = array<i64: 1, 128>}, {transform_indices = @transform_5, window_bounds = array<i64: 128, 128>}, {transform_indices = @transform_6, window_bounds = array<i64: 128, 128>}]} {
    %c0_i32 = arith.constant 0 : i32
    %0 = arith.cmpi eq, %arg2, %c0_i32 : i32
    %1 = arith.extui %0 : i1 to i32
    %c0_i32_0 = arith.constant 0 : i32
    %2 = arith.cmpi ne, %1, %c0_i32_0 : i32
    scf.if %2 {
      %cst_18 = arith.constant 0.000000e+00 : f32
      %18 = vector.broadcast %cst_18 : f32 to vector<128x128xf32>
      %c0_19 = arith.constant 0 : index
      %c0_20 = arith.constant 0 : index
      %19 = vector.load %arg10[%c0_19, %c0_20] : memref<128x128xf32, #tpu.memory_space<vmem>>, vector<128x128xf32>
      tpu.vector_store %arg10[%c0_19, %c0_20], %18 {strides = array<i32>} : memref<128x128xf32, #tpu.memory_space<vmem>>, vector<128x128xf32>,
      %cst_21 = arith.constant 0.000000e+00 : f32
      %20 = vector.broadcast %cst_21 : f32 to vector<128x128xf32>
      %c0_22 = arith.constant 0 : index
      %c0_23 = arith.constant 0 : index
      %21 = vector.load %arg11[%c0_22, %c0_23] : memref<128x128xf32, #tpu.memory_space<vmem>>, vector<128x128xf32>
      tpu.vector_store %arg11[%c0_22, %c0_23], %20 {strides = array<i32>} : memref<128x128xf32, #tpu.memory_space<vmem>>, vector<128x128xf32>,
    } else {
    }
    %c0 = arith.constant 0 : index
    %c0_1 = arith.constant 0 : index
    %3 = vector.load %arg10[%c0, %c0_1] : memref<128x128xf32, #tpu.memory_space<vmem>>, vector<128x128xf32>
    %c0_2 = arith.constant 0 : index
    %c0_3 = arith.constant 0 : index
    %4 = vector.load %arg3[%c0_2, %c0_3] : memref<128x128xbf16, #tpu.memory_space<vmem>>, vector<128x128xbf16>
    %c0_4 = arith.constant 0 : index
    %c0_5 = arith.constant 0 : index
    %5 = vector.load %arg4[%c0_4, %c0_5] : memref<128x128xbf16, #tpu.memory_space<vmem>>, vector<128x128xbf16>
    %cst = arith.constant dense<0.000000e+00> : vector<128x128xf32>
    %6 = tpu.matmul %4, %5, %cst {dimension_numbers = #tpu.dot_dimension_numbers<[1], [1], [0], [0], [0, 0, 1, 0], [], []>} : vector<128x128xbf16>, vector<128x128xbf16>, vector<128x128xf32> -> vector<128x128xf32>
    %7 = arith.addf %3, %6 : vector<128x128xf32>
    %c0_6 = arith.constant 0 : index
    %c0_7 = arith.constant 0 : index
    %8 = vector.load %arg10[%c0_6, %c0_7] : memref<128x128xf32, #tpu.memory_space<vmem>>, vector<128x128xf32>
    tpu.vector_store %arg10[%c0_6, %c0_7], %7 {strides = array<i32>} : memref<128x128xf32, #tpu.memory_space<vmem>>, vector<128x128xf32>,
    %c0_8 = arith.constant 0 : index
    %c0_9 = arith.constant 0 : index
    %9 = vector.load %arg11[%c0_8, %c0_9] : memref<128x128xf32, #tpu.memory_space<vmem>>, vector<128x128xf32>
    %c0_10 = arith.constant 0 : index
    %c0_11 = arith.constant 0 : index
    %10 = vector.load %arg3[%c0_10, %c0_11] : memref<128x128xbf16, #tpu.memory_space<vmem>>, vector<128x128xbf16>
    %c0_12 = arith.constant 0 : index
    %c0_13 = arith.constant 0 : index
    %11 = vector.load %arg5[%c0_12, %c0_13] : memref<128x128xbf16, #tpu.memory_space<vmem>>, vector<128x128xbf16>
    %cst_14 = arith.constant dense<0.000000e+00> : vector<128x128xf32>
    %12 = tpu.matmul %10, %11, %cst_14 {dimension_numbers = #tpu.dot_dimension_numbers<[1], [1], [0], [0], [0, 0, 1, 0], [], []>} : vector<128x128xbf16>, vector<128x128xbf16>, vector<128x128xf32> -> vector<128x128xf32>
    %13 = arith.addf %9, %12 : vector<128x128xf32>
    %c0_15 = arith.constant 0 : index
    %c0_16 = arith.constant 0 : index
    %14 = vector.load %arg11[%c0_15, %c0_16] : memref<128x128xf32, #tpu.memory_space<vmem>>, vector<128x128xf32>
    tpu.vector_store %arg11[%c0_15, %c0_16], %13 {strides = array<i32>} : memref<128x128xf32, #tpu.memory_space<vmem>>, vector<128x128xf32>,
    %c1_i32 = arith.constant 1 : i32
    %15 = arith.cmpi eq, %arg2, %c1_i32 : i32
    %16 = arith.extui %15 : i1 to i32
    %c0_i32_17 = arith.constant 0 : i32
    %17 = arith.cmpi ne, %16, %c0_i32_17 : i32
    scf.if %17 {
      %c0_18 = arith.constant 0 : index
      %c0_19 = arith.constant 0 : index
      %18 = vector.load %arg10[%c0_18, %c0_19] : memref<128x128xf32, #tpu.memory_space<vmem>>, vector<128x128xf32>
      %c0_20 = arith.constant 0 : index
      %c0_21 = arith.constant 0 : index
      %19 = vector.load %arg6[%c0_20, %c0_21] : memref<1x128xf32, #tpu.memory_space<vmem>>, vector<1x128xf32>
      %20 = vector.broadcast %19 : vector<1x128xf32> to vector<128x128xf32>
      %21 = arith.addf %18, %20 : vector<128x128xf32>
      %22 = arith.truncf %21 : vector<128x128xf32> to vector<128x128xbf16>
      %c0_22 = arith.constant 0 : index
      %c0_23 = arith.constant 0 : index
      %23 = vector.load %arg8[%c0_22, %c0_23] : memref<128x128xbf16, #tpu.memory_space<vmem>>, vector<128x128xbf16>
      tpu.vector_store %arg8[%c0_22, %c0_23], %22 {strides = array<i32>} : memref<128x128xbf16, #tpu.memory_space<vmem>>, vector<128x128xbf16>,
      %c0_24 = arith.constant 0 : index
      %c0_25 = arith.constant 0 : index
      %24 = vector.load %arg11[%c0_24, %c0_25] : memref<128x128xf32, #tpu.memory_space<vmem>>, vector<128x128xf32>
      %c0_26 = arith.constant 0 : index
      %c0_27 = arith.constant 0 : index
      %25 = vector.load %arg7[%c0_26, %c0_27] : memref<1x128xf32, #tpu.memory_space<vmem>>, vector<1x128xf32>
      %26 = vector.broadcast %25 : vector<1x128xf32> to vector<128x128xf32>
      %27 = arith.addf %24, %26 : vector<128x128xf32>
      %28 = arith.truncf %27 : vector<128x128xf32> to vector<128x128xbf16>
      %c0_28 = arith.constant 0 : index
      %c0_29 = arith.constant 0 : index
      %29 = vector.load %arg9[%c0_28, %c0_29] : memref<128x128xbf16, #tpu.memory_space<vmem>>, vector<128x128xbf16>
      tpu.vector_store %arg9[%c0_28, %c0_29], %28 {strides = array<i32>} : memref<128x128xbf16, #tpu.memory_space<vmem>>, vector<128x128xbf16>,
    } else {
    }
    return
  }
  func.func @transform_0(%arg0: i32, %arg1: i32, %arg2: i32) -> (i32, i32) {
    %c0_i32 = arith.constant 0 : i32
    return %arg0, %arg2 : i32, i32
  }
  func.func @transform_1(%arg0: i32, %arg1: i32, %arg2: i32) -> (i32, i32) {
    %c0_i32 = arith.constant 0 : i32
    return %arg1, %arg2 : i32, i32
  }
  func.func @transform_2(%arg0: i32, %arg1: i32, %arg2: i32) -> (i32, i32) {
    %c2_i32 = arith.constant 2 : i32
    %0 = arith.addi %c2_i32, %arg1 : i32
    %c0_i32 = arith.constant 0 : i32
    return %0, %arg2 : i32, i32
  }
  func.func @transform_3(%arg0: i32, %arg1: i32, %arg2: i32) -> (i32, i32) {
    %c0_i32 = arith.constant 0 : i32
    %c0_i32_0 = arith.constant 0 : i32
    return %c0_i32, %arg1 : i32, i32
  }
  func.func @transform_4(%arg0: i32, %arg1: i32, %arg2: i32) -> (i32, i32) {
    %c0_i32 = arith.constant 0 : i32
    %c0_i32_0 = arith.constant 0 : i32
    return %c0_i32, %arg1 : i32, i32
  }
  func.func @transform_5(%arg0: i32, %arg1: i32, %arg2: i32) -> (i32, i32) {
    %c0_i32 = arith.constant 0 : i32
    return %arg0, %arg1 : i32, i32
  }
  func.func @transform_6(%arg0: i32, %arg1: i32, %arg2: i32) -> (i32, i32) {
    %c0_i32 = arith.constant 0 : i32
    return %arg0, %arg1 : i32, i32
  }
}

</mosaic_0001>

<llo_original>
// kernel: tpu_custom_call.1
$region0: #{tpu_custom_call.1}
  #allocation0 [shape = 'u32[]', space=smem, size = 0x4, offset = 0x4, fixed_abs, tag = 'smem constant byte address 0x4 - core index']
  #allocation1 [shape = 'u32[144,128]{1,0:T(1,128)}', space=vmem, size = 0x12000, scoped, tag = 'internal scratch']
  #allocation2 [shape = 'f32[128,128]{1,0:T(8,128)}', space=vmem, size = 0x10000, scoped, tag = 'scratch operand']
  #allocation3 [shape = 'f32[128,128]{1,0:T(8,128)}', space=vmem, size = 0x10000, scoped, tag = 'scratch operand']
  %s0 = inlined_call_operand.hbm [shape: bf16[512,256], index: 0, kind: input, shape index: {}]
  %s1 = inlined_call_operand.hbm [shape: bf16[512,256], index: 1, kind: input, shape index: {}]
  %s2 = inlined_call_operand.hbm [shape: bf16[512,256], index: 2, kind: input, shape index: {}]
  %s3 = inlined_call_operand.vmem [shape: f32[1,256], index: 3, kind: input, shape index: {}]
  %s4 = inlined_call_operand.vmem [shape: f32[1,256], index: 4, kind: input, shape index: {}]
  %s5 = inlined_call_operand.hbm [shape: bf16[512,256], index: 5, kind: output, shape index: {0}]
  %s6 = inlined_call_operand.hbm [shape: bf16[512,256], index: 6, kind: output, shape index: {1}]
  %7 = xla_tuple %s5, %s6
  %s8 = sld [smem:[#allocation0]]
  $region81: #{tpu_custom_call.1} parent=0
    _
  %s10 = ssub.s32 1, %s8
  %s11 = scalar_select 0, %s10, %s8
  $region1: #{tpu_custom_call.1} parent=0
    #allocation4 [shape = 'u8[65536]{0}', space=vmem, size = 0x10000, scoped, tag = 'input window, operand 0']
    #allocation5 [shape = 's32[2]{0}', space=sflag, size = 0x8, scoped, tag = 'scoped memory for tpu_custom_call.1']
    #allocation6 [shape = 's32[2]{0}', space=sflag, size = 0x8, scoped, tag = 'scoped memory for tpu_custom_call.1']
    #allocation7 [shape = 'u8[65536]{0}', space=vmem, size = 0x10000, scoped, tag = 'input window, operand 1']
    #allocation8 [shape = 's32[2]{0}', space=sflag, size = 0x8, scoped, tag = 'scoped memory for tpu_custom_call.1']
    #allocation9 [shape = 'u8[65536]{0}', space=vmem, size = 0x10000, scoped, tag = 'input window, operand 2']
    #allocation10 [shape = 'u8[65536]{0}', space=vmem, size = 0x10000, scoped, tag = 'output window, operand 0']
    #allocation11 [shape = 'u8[65536]{0}', space=vmem, size = 0x10000, scoped, tag = 'output window, operand 1']
    #allocation12 [shape = 's32[2]{0}', space=sflag, size = 0x8, scoped, tag = 'scoped memory for tpu_custom_call.1']
    %12 = vsyncpa [#allocation5], 0
    %s13 = scalar_lea.sflag [#allocation5], 1
    %14 = vsyncpa %s13, 0
    %15 = vsyncpa [#allocation8], 0
    %s16 = scalar_lea.sflag [#allocation8], 1
    %17 = vsyncpa %s16, 0
    %18 = vsyncpa [#allocation6], 0
    %s19 = scalar_lea.sflag [#allocation6], 1
    %20 = vsyncpa %s19, 0
    %21 = vsyncpa [#allocation12], 0
    %s22 = scalar_lea.sflag [#allocation12], 1
    %23 = vsyncpa %s22, 0
    loop: start=0, step=1, limit=18
    $region2: #{tpu_custom_call.1} parent=1 // loop_pre_header
      _
    $region3: #{tpu_custom_call.1} parent=1 // loop_header
      %s25 = sphi 0, %s29
      %p26 = scmp.ge.s32.totalorder %s25, 18
      %s32 = sphi 0, %s51
      %s33 = sphi 0, %s47
      %s34 = sphi 0, %s43
      %s35 = sphi 0, %s32
      %s36 = sphi 0, %s33
      %s37 = sphi 0, %s34
      %s38 = sphi 0, %s35
      %s39 = sphi 0, %s36
      %s40 = sphi 0, %s37
      %s56 = sphi 0, %s58
      %s59 = sphi 0, %s56
      %s60 = sphi 0, %s59
      %s76 = sphi 0, %s60
      %s84 = sphi 0, %s86
      %s87 = sphi 0, %s84
      %s88 = sphi 0, %s87
      %s104 = sphi 0, %s88
      %s114 = sphi 0, %s116
      %s117 = sphi 0, %s114
      %s118 = sphi 0, %s117
      %s134 = sphi 0, %s118
      %s140 = sphi 0, %s142
      %s143 = sphi 0, %s140
      %s144 = sphi 0, %s143
      %s160 = sphi 0, %s144
      %s166 = sphi 0, %s168
      %s169 = sphi 0, %s166
      %s170 = sphi 0, %s169
      %s186 = sphi 0, %s170
      %s194 = sphi 0, %s196
      %s197 = sphi 0, %s194
      %s198 = sphi 0, %s197
      %s214 = sphi 0, %s198
      %s222 = sphi 0, %s224
      %s225 = sphi 0, %s222
      %s226 = sphi 0, %s225
      %s242 = sphi 0, %s226
    $region4: #{tpu_custom_call.1} parent=1 // loop_header_branch
      %28 = sbr.rel (%p26) target = $region8
    $region5: #{tpu_custom_call.1} parent=1 // loop_body
      %s30 = ssub.s32 %s25, 1
      %s31 = ssub.s32 %s25, 2
      %s41 = sadd.s32 1, %s34
      %p42 = scmp.ge.s32.totalorder %s41, 2
      %s43 = scalar_select %p42, 0, %s41
      %s44 = sadd.s32 1, %s33
      %s45 = scalar_select %p42, %s44, %s33
      %p46 = scmp.ge.s32.totalorder %s45, 2
      %s47 = scalar_select %p46, 0, %s45
      %s48 = sadd.s32 1, %s32
      %s49 = scalar_select %p46, %s48, %s32
      %p50 = scmp.ge.s32.totalorder %s49, 4
      %s51 = scalar_select %p50, 0, %s49
      %s52 = ssub.s32 %s32, %s51
      %s53 = ssub.s32 %s34, %s43
      %s54 = sor.u32 %s52, %s53
      %p55 = scmp.eq.s32.totalorder %s54, 0
      %s57 = sadd.s32 %s56, 1
      %s58 = scalar_select %p55, %s56, %s57
      %p61 = pneg %p55
      %p62 = scmp.eq.s32.totalorder %s25, 15
      %p63 = por %p61, %p62
      %p64 = scmp.ne.s32.totalorder %s56, %s59
      %p65 = scmp.eq.s32.totalorder %s25, 0
      %p66 = por %p64, %p65
      %p67 = scmp.ne.s32.totalorder %s56, %s59
      %p68 = scmp.eq.s32.totalorder %s30, 15
      %p69 = por %p67, %p68
      %p70 = scmp.ne.s32.totalorder %s59, %s60
      %p71 = scmp.eq.s32.totalorder %s30, 0
      %p72 = por %p70, %p71
      %p73 = scmp.ne.s32.totalorder %s59, %s60
      %p74 = scmp.eq.s32.totalorder %s31, 15
      %p75 = por %p73, %p74
      %p77 = scmp.ne.s32.totalorder %s60, %s76
      %p78 = scmp.eq.s32.totalorder %s31, 0
      %p79 = por %p77, %p78
      %s80 = ssub.s32 %s33, %s47
      %s81 = ssub.s32 %s34, %s43
      %s82 = sor.u32 %s80, %s81
      %p83 = scmp.eq.s32.totalorder %s82, 0
      %s85 = sadd.s32 %s84, 1
      %s86 = scalar_select %p83, %s84, %s85
      %p89 = pneg %p83
      %p90 = scmp.eq.s32.totalorder %s25, 15
      %p91 = por %p89, %p90
      %p92 = scmp.ne.s32.totalorder %s84, %s87
      %p93 = scmp.eq.s32.totalorder %s25, 0
      %p94 = por %p92, %p93
      %p95 = scmp.ne.s32.totalorder %s84, %s87
      %p96 = scmp.eq.s32.totalorder %s30, 15
      %p97 = por %p95, %p96
      %p98 = scmp.ne.s32.totalorder %s87, %s88
      %p99 = scmp.eq.s32.totalorder %s30, 0
      %p100 = por %p98, %p99
      %p101 = scmp.ne.s32.totalorder %s87, %s88
      %p102 = scmp.eq.s32.totalorder %s31, 15
      %p103 = por %p101, %p102
      %p105 = scmp.ne.s32.totalorder %s88, %s104
      %p106 = scmp.eq.s32.totalorder %s31, 0
      %p107 = por %p105, %p106
      %s108 = sadd.s32 %s33, 2
      %s109 = sadd.s32 %s47, 2
      %s110 = ssub.s32 %s108, %s109
      %s111 = ssub.s32 %s34, %s43
      %s112 = sor.u32 %s110, %s111
      %p113 = scmp.eq.s32.totalorder %s112, 0
      %s115 = sadd.s32 %s114, 1
      %s116 = scalar_select %p113, %s114, %s115
      %p119 = pneg %p113
      %p120 = scmp.eq.s32.totalorder %s25, 15
      %p121 = por %p119, %p120
      %p122 = scmp.ne.s32.totalorder %s114, %s117
      %p123 = scmp.eq.s32.totalorder %s25, 0
      %p124 = por %p122, %p123
      %p125 = scmp.ne.s32.totalorder %s114, %s117
      %p126 = scmp.eq.s32.totalorder %s30, 15
      %p127 = por %p125, %p126
      %p128 = scmp.ne.s32.totalorder %s117, %s118
      %p129 = scmp.eq.s32.totalorder %s30, 0
      %p130 = por %p128, %p129
      %p131 = scmp.ne.s32.totalorder %s117, %s118
      %p132 = scmp.eq.s32.totalorder %s31, 15
      %p133 = por %p131, %p132
      %p135 = scmp.ne.s32.totalorder %s118, %s134
      %p136 = scmp.eq.s32.totalorder %s31, 0
      %p137 = por %p135, %p136
      %s138 = ssub.s32 %s33, %s47
      %p139 = scmp.eq.s32.totalorder %s138, 0
      %s141 = sadd.s32 %s140, 1
      %s142 = scalar_select %p139, %s140, %s141
      %p145 = pneg %p139
      %p146 = scmp.eq.s32.totalorder %s25, 15
      %p147 = por %p145, %p146
      %p148 = scmp.ne.s32.totalorder %s140, %s143
      %p149 = scmp.eq.s32.totalorder %s25, 0
      %p150 = por %p148, %p149
      %p151 = scmp.ne.s32.totalorder %s140, %s143
      %p152 = scmp.eq.s32.totalorder %s30, 15
      %p153 = por %p151, %p152
      %p154 = scmp.ne.s32.totalorder %s143, %s144
      %p155 = scmp.eq.s32.totalorder %s30, 0
      %p156 = por %p154, %p155
      %p157 = scmp.ne.s32.totalorder %s143, %s144
      %p158 = scmp.eq.s32.totalorder %s31, 15
      %p159 = por %p157, %p158
      %p161 = scmp.ne.s32.totalorder %s144, %s160
      %p162 = scmp.eq.s32.totalorder %s31, 0
      %p163 = por %p161, %p162
      %s164 = ssub.s32 %s33, %s47
      %p165 = scmp.eq.s32.totalorder %s164, 0
      %s167 = sadd.s32 %s166, 1
      %s168 = scalar_select %p165, %s166, %s167
      %p171 = pneg %p165
      %p172 = scmp.eq.s32.totalorder %s25, 15
      %p173 = por %p171, %p172
      %p174 = scmp.ne.s32.totalorder %s166, %s169
      %p175 = scmp.eq.s32.totalorder %s25, 0
      %p176 = por %p174, %p175
      %p177 = scmp.ne.s32.totalorder %s166, %s169
      %p178 = scmp.eq.s32.totalorder %s30, 15
      %p179 = por %p177, %p178
      %p180 = scmp.ne.s32.totalorder %s169, %s170
      %p181 = scmp.eq.s32.totalorder %s30, 0
      %p182 = por %p180, %p181
      %p183 = scmp.ne.s32.totalorder %s169, %s170
      %p184 = scmp.eq.s32.totalorder %s31, 15
      %p185 = por %p183, %p184
      %p187 = scmp.ne.s32.totalorder %s170, %s186
      %p188 = scmp.eq.s32.totalorder %s31, 0
      %p189 = por %p187, %p188
      %s190 = ssub.s32 %s32, %s51
      %s191 = ssub.s32 %s33, %s47
      %s192 = sor.u32 %s190, %s191
      %p193 = scmp.eq.s32.totalorder %s192, 0
      %s195 = sadd.s32 %s194, 1
      %s196 = scalar_select %p193, %s194, %s195
      %p199 = pneg %p193
      %p200 = scmp.eq.s32.totalorder %s25, 15
      %p201 = por %p199, %p200
      %p202 = scmp.ne.s32.totalorder %s194, %s197
      %p203 = scmp.eq.s32.totalorder %s25, 0
      %p204 = por %p202, %p203
      %p205 = scmp.ne.s32.totalorder %s194, %s197
      %p206 = scmp.eq.s32.totalorder %s30, 15
      %p207 = por %p205, %p206
      %p208 = scmp.ne.s32.totalorder %s197, %s198
      %p209 = scmp.eq.s32.totalorder %s30, 0
      %p210 = por %p208, %p209
      %p211 = scmp.ne.s32.totalorder %s197, %s198
      %p212 = scmp.eq.s32.totalorder %s31, 15
      %p213 = por %p211, %p212
      %p215 = scmp.ne.s32.totalorder %s198, %s214
      %p216 = scmp.eq.s32.totalorder %s31, 0
      %p217 = por %p215, %p216
      %s218 = ssub.s32 %s32, %s51
      %s219 = ssub.s32 %s33, %s47
      %s220 = sor.u32 %s218, %s219
      %p221 = scmp.eq.s32.totalorder %s220, 0
      %s223 = sadd.s32 %s222, 1
      %s224 = scalar_select %p221, %s222, %s223
      %p227 = pneg %p221
      %p228 = scmp.eq.s32.totalorder %s25, 15
      %p229 = por %p227, %p228
      %p230 = scmp.ne.s32.totalorder %s222, %s225
      %p231 = scmp.eq.s32.totalorder %s25, 0
      %p232 = por %p230, %p231
      %p233 = scmp.ne.s32.totalorder %s222, %s225
      %p234 = scmp.eq.s32.totalorder %s30, 15
      %p235 = por %p233, %p234
      %p236 = scmp.ne.s32.totalorder %s225, %s226
      %p237 = scmp.eq.s32.totalorder %s30, 0
      %p238 = por %p236, %p237
      %p239 = scmp.ne.s32.totalorder %s225, %s226
      %p240 = scmp.eq.s32.totalorder %s31, 15
      %p241 = por %p239, %p240
      %p243 = scmp.ne.s32.totalorder %s226, %s242
      %p244 = scmp.eq.s32.totalorder %s31, 0
      %p245 = por %p243, %p244
      %p246 = scmp.le.s32.totalorder 1, %s25
      %p247 = scmp.lt.s32.totalorder %s25, 17
      %p248 = pnand %p246, %p247
      %p249 = pneg %p248
      // Predicated region
      $region9: #{tpu_custom_call.1} parent=5 // pred_check
        _
      $region10: #{tpu_custom_call.1} parent=5 // pred_check_branch
        %251 = sbr.rel (%p248) target = $region12
      $region11: #{tpu_custom_call.1} parent=5 // pred_region
        %s252 = ssub.s32 %s25, 1
      $region12: #{tpu_custom_call.1} parent=5 // pred_fallthru
        _
      %p253 = scmp.lt.s32.totalorder %s25, 16
      // Predicated region
      $region13: #{tpu_custom_call.1} parent=5 // pred_check
        %p254 = pneg %p253
      $region14: #{tpu_custom_call.1} parent=5 // pred_check_branch
        %256 = sbr.rel (%p254) target = $region16
      $region15: #{tpu_custom_call.1} parent=5 // pred_region
        // Predicated region
        $region17: #{tpu_custom_call.1} parent=15 // pred_check
          %p257 = pneg %p66
        $region18: #{tpu_custom_call.1} parent=15 // pred_check_branch
          %259 = sbr.rel (%p257) target = $region20
        $region19: #{tpu_custom_call.1} parent=15 // pred_region
          %s260 = sand.u32 %s56, 1
          %s261 = scalar_lea.sflag [#allocation5], %s260
          %s262 = sand.u32 %s56, 1
          %s263 = smul.addr %s262, 64
          %s264 = scalar_lea.vmem [#allocation4], %s263
          %s265 = smul.u32 16, %s32
          %s267 = ssub.s32 1024, 1024
          %268 = vsyncadd %s261, %s267
          %s269 = smul.addr %s265, 2
          %s270 = sadd.s32 %s34, %s269
          %s271 = smul.addr %s270, 64
          %s272 = scalar_lea.hbm %s0, %s271
          %s273 = sshll.u32 %s264, 4
          %s274 = int_to_ptr.vmem [resolvable:$true] %s273
          %279 = dma.hbm_to_vmem [thread:$0]  %s272, 1024, %s274, %s261, 128, 64, 4
        $region20: #{tpu_custom_call.1} parent=15 // pred_fallthru
          _
        // Predicated region
        $region21: #{tpu_custom_call.1} parent=15 // pred_check
          %p280 = pneg %p94
        $region22: #{tpu_custom_call.1} parent=15 // pred_check_branch
          %282 = sbr.rel (%p280) target = $region24
        $region23: #{tpu_custom_call.1} parent=15 // pred_region
          %s283 = sand.u32 %s25, 1
          %s284 = scalar_lea.sflag [#allocation8], %s283
          %s285 = sand.u32 %s84, 1
          %s286 = smul.addr %s285, 64
          %s287 = scalar_lea.vmem [#allocation7], %s286
          %s288 = smul.u32 16, %s33
          %s290 = ssub.s32 1024, 1024
          %291 = vsyncadd %s284, %s290
          %s292 = smul.addr %s288, 2
          %s293 = sadd.s32 %s34, %s292
          %s294 = smul.addr %s293, 64
          %s295 = scalar_lea.hbm %s1, %s294
          %s296 = sshll.u32 %s287, 4
          %s297 = int_to_ptr.vmem [resolvable:$true] %s296
          %302 = dma.hbm_to_vmem [thread:$0]  %s295, 1024, %s297, %s284, 128, 64, 4
        $region24: #{tpu_custom_call.1} parent=15 // pred_fallthru
          _
        // Predicated region
        $region25: #{tpu_custom_call.1} parent=15 // pred_check
          %p303 = pneg %p124
        $region26: #{tpu_custom_call.1} parent=15 // pred_check_branch
          %305 = sbr.rel (%p303) target = $region28
        $region27: #{tpu_custom_call.1} parent=15 // pred_region
          %s306 = sand.u32 %s25, 1
          %s307 = scalar_lea.sflag [#allocation8], %s306
          %s308 = sand.u32 %s114, 1
          %s309 = smul.addr %s308, 64
          %s310 = scalar_lea.vmem [#allocation9], %s309
          %s311 = sadd.s32 %s33, 2
          %s312 = smul.u32 16, %s311
          %s314 = ssub.s32 1024, 1024
          %315 = vsyncadd %s307, %s314
          %s316 = smul.addr %s312, 2
          %s317 = sadd.s32 %s34, %s316
          %s318 = smul.addr %s317, 64
          %s319 = scalar_lea.hbm %s2, %s318
          %s320 = sshll.u32 %s310, 4
          %s321 = int_to_ptr.vmem [resolvable:$true] %s320
          %326 = dma.hbm_to_vmem [thread:$0]  %s319, 1024, %s321, %s307, 128, 64, 4
        $region28: #{tpu_custom_call.1} parent=15 // pred_fallthru
          _
        // Predicated region
        $region29: #{tpu_custom_call.1} parent=15 // pred_check
          %p327 = pneg %p150
        $region30: #{tpu_custom_call.1} parent=15 // pred_check_branch
          %329 = sbr.rel (%p327) target = $region32
        $region31: #{tpu_custom_call.1} parent=15 // pred_region
          %p330 = scmp.lt.s32.totalorder %s33, 1
          %s331 = scalar_select %p330, %s33, 1
          %s332 = scalar_lea.vmem %s3, %s331
        $region32: #{tpu_custom_call.1} parent=15 // pred_fallthru
          _
        // Predicated region
        $region33: #{tpu_custom_call.1} parent=15 // pred_check
          %p333 = pneg %p176
        $region34: #{tpu_custom_call.1} parent=15 // pred_check_branch
          %335 = sbr.rel (%p333) target = $region36
        $region35: #{tpu_custom_call.1} parent=15 // pred_region
          %p336 = scmp.lt.s32.totalorder %s33, 1
          %s337 = scalar_select %p336, %s33, 1
          %s338 = scalar_lea.vmem %s4, %s337
        $region36: #{tpu_custom_call.1} parent=15 // pred_fallthru
          _
      $region16: #{tpu_custom_call.1} parent=5 // pred_fallthru
        _
      %p339 = scmp.le.s32.totalorder 1, %s25
      %p340 = scmp.lt.s32.totalorder %s25, 17
      %p341 = pnand %p339, %p340
      %p342 = pneg %p341
      // Predicated region
      $region37: #{tpu_custom_call.1} parent=5 // pred_check
        _
      $region38: #{tpu_custom_call.1} parent=5 // pred_check_branch
        %344 = sbr.rel (%p341) target = $region40
      $region39: #{tpu_custom_call.1} parent=5 // pred_region
        %s345 = ssub.s32 %s25, 1
        %s346 = sand.u32 %s59, 1
        %s347 = scalar_lea.sflag [#allocation5], %s346
        %s348 = sand.u32 %s59, 1
        %s349 = smul.addr %s348, 64
        %s350 = scalar_lea.vmem [#allocation4], %s349
        // Predicated region
        $region41: #{tpu_custom_call.1} parent=39 // pred_check
          %p351 = pneg %p72
        $region42: #{tpu_custom_call.1} parent=39 // pred_check_branch
          %353 = sbr.rel (%p351) target = $region44
        $region43: #{tpu_custom_call.1} parent=39 // pred_region
          %354 = dma.done %s347, 1024
        $region44: #{tpu_custom_call.1} parent=39 // pred_fallthru
          _
        %s355 = sand.u32 %s30, 1
        %s356 = scalar_lea.sflag [#allocation8], %s355
        %s357 = sand.u32 %s87, 1
        %s358 = smul.addr %s357, 64
        %s359 = scalar_lea.vmem [#allocation7], %s358
        // Predicated region
        $region45: #{tpu_custom_call.1} parent=39 // pred_check
          %p360 = pneg %p100
        $region46: #{tpu_custom_call.1} parent=39 // pred_check_branch
          %362 = sbr.rel (%p360) target = $region48
        $region47: #{tpu_custom_call.1} parent=39 // pred_region
          %363 = dma.done %s356, 1024
        $region48: #{tpu_custom_call.1} parent=39 // pred_fallthru
          _
        %s364 = sand.u32 %s30, 1
        %s365 = scalar_lea.sflag [#allocation8], %s364
        %s366 = sand.u32 %s117, 1
        %s367 = smul.addr %s366, 64
        %s368 = scalar_lea.vmem [#allocation9], %s367
        // Predicated region
        $region49: #{tpu_custom_call.1} parent=39 // pred_check
          %p369 = pneg %p130
        $region50: #{tpu_custom_call.1} parent=39 // pred_check_branch
          %371 = sbr.rel (%p369) target = $region52
        $region51: #{tpu_custom_call.1} parent=39 // pred_region
          %372 = dma.done %s365, 1024
        $region52: #{tpu_custom_call.1} parent=39 // pred_fallthru
          _
        %s373 = sand.u32 %s59, 1
        %s374 = scalar_lea.sflag [#allocation5], %s373
        %s375 = sand.u32 %s59, 1
        %s376 = smul.addr %s375, 64
        %s377 = scalar_lea.vmem [#allocation4], %s376
        %p378 = pneg %p72
        %p379 = pneg %p69
        %s380 = sand.u32 %s30, 1
        %s381 = scalar_lea.sflag [#allocation8], %s380
        %s382 = sand.u32 %s87, 1
        %s383 = smul.addr %s382, 64
        %s384 = scalar_lea.vmem [#allocation7], %s383
        %p385 = pneg %p100
        %p386 = pneg %p97
        %s387 = sand.u32 %s30, 1
        %s388 = scalar_lea.sflag [#allocation8], %s387
        %s389 = sand.u32 %s117, 1
        %s390 = smul.addr %s389, 64
        %s391 = scalar_lea.vmem [#allocation9], %s390
        %p392 = pneg %p130
        %p393 = pneg %p127
        %p394 = scmp.lt.s32.totalorder %s36, 1
        %s395 = scalar_select %p394, %s36, 1
        %s396 = scalar_lea.vmem %s3, %s395
        %p397 = pneg %p156
        %p398 = pneg %p153
        %p399 = scmp.lt.s32.totalorder %s36, 1
        %s400 = scalar_select %p399, %s36, 1
        %s401 = scalar_lea.vmem %s4, %s400
        %p402 = pneg %p182
        %p403 = pneg %p179
        %p404 = pneg %p210
        %p405 = pneg %p207
        %s406 = sand.u32 %s197, 1
        %s407 = scalar_lea.sflag [#allocation6], %s406
        %s408 = sand.u32 %s197, 1
        %s409 = smul.addr %s408, 64
        %s410 = scalar_lea.vmem [#allocation10], %s409
        %p411 = pneg %p238
        %p412 = pneg %p235
        %s413 = sand.u32 %s225, 1
        %s414 = scalar_lea.sflag [#allocation12], %s413
        %s415 = sand.u32 %s225, 1
        %s416 = smul.addr %s415, 64
        %s417 = scalar_lea.vmem [#allocation11], %s416
        %s418 = smul.u32 16, %s35
        %s419 = smul.u32 16, %s36
        %s420 = sadd.s32 %s36, 2
        %s421 = smul.u32 16, %s420
        %p422 = scmp.lt.s32.totalorder %s36, 1
        %s423 = scalar_select %p422, %s36, 1
        %s424 = scalar_lea.vmem %s3, %s423
        %p425 = scmp.lt.s32.totalorder %s36, 1
        %s426 = scalar_select %p425, %s36, 1
        %s427 = scalar_lea.vmem %s4, %s426
        %s428 = smul.u32 16, %s35
        %s429 = smul.u32 16, %s35
        %p431 = scmp.eq.s32.totalorder %s37, 0
        // Predicated region
        $region53: #{tpu_custom_call.1} parent=39 // pred_check
          %p432 = pneg %p431
        $region54: #{tpu_custom_call.1} parent=39 // pred_check_branch
          %434 = sbr.rel (%p432) target = $region56
        $region55: #{tpu_custom_call.1} parent=39 // pred_region
          %435 = vst [vmem:[#allocation2] sm:$0xff] 0.0
          %436 = vst [vmem:[#allocation2 + $0x8] sm:$0xff] 0.0
          %437 = vst [vmem:[#allocation2 + $0x10] sm:$0xff] 0.0
          %438 = vst [vmem:[#allocation2 + $0x18] sm:$0xff] 0.0
          %439 = vst [vmem:[#allocation2 + $0x20] sm:$0xff] 0.0
          %440 = vst [vmem:[#allocation2 + $0x28] sm:$0xff] 0.0
          %441 = vst [vmem:[#allocation2 + $0x30] sm:$0xff] 0.0
          %442 = vst [vmem:[#allocation2 + $0x38] sm:$0xff] 0.0
          %443 = vst [vmem:[#allocation2 + $0x40] sm:$0xff] 0.0
          %444 = vst [vmem:[#allocation2 + $0x48] sm:$0xff] 0.0
          %445 = vst [vmem:[#allocation2 + $0x50] sm:$0xff] 0.0
          %446 = vst [vmem:[#allocation2 + $0x58] sm:$0xff] 0.0
          %447 = vst [vmem:[#allocation2 + $0x60] sm:$0xff] 0.0
          %448 = vst [vmem:[#allocation2 + $0x68] sm:$0xff] 0.0
          %449 = vst [vmem:[#allocation2 + $0x70] sm:$0xff] 0.0
          %450 = vst [vmem:[#allocation2 + $0x78] sm:$0xff] 0.0
          %451 = vst [vmem:[#allocation3] sm:$0xff] 0.0
          %452 = vst [vmem:[#allocation3 + $0x8] sm:$0xff] 0.0
          %453 = vst [vmem:[#allocation3 + $0x10] sm:$0xff] 0.0
          %454 = vst [vmem:[#allocation3 + $0x18] sm:$0xff] 0.0
          %455 = vst [vmem:[#allocation3 + $0x20] sm:$0xff] 0.0
          %456 = vst [vmem:[#allocation3 + $0x28] sm:$0xff] 0.0
          %457 = vst [vmem:[#allocation3 + $0x30] sm:$0xff] 0.0
          %458 = vst [vmem:[#allocation3 + $0x38] sm:$0xff] 0.0
          %459 = vst [vmem:[#allocation3 + $0x40] sm:$0xff] 0.0
          %460 = vst [vmem:[#allocation3 + $0x48] sm:$0xff] 0.0
          %461 = vst [vmem:[#allocation3 + $0x50] sm:$0xff] 0.0
          %462 = vst [vmem:[#allocation3 + $0x58] sm:$0xff] 0.0
          %463 = vst [vmem:[#allocation3 + $0x60] sm:$0xff] 0.0
          %464 = vst [vmem:[#allocation3 + $0x68] sm:$0xff] 0.0
          %465 = vst [vmem:[#allocation3 + $0x70] sm:$0xff] 0.0
          %466 = vst [vmem:[#allocation3 + $0x78] sm:$0xff] 0.0
        $region56: #{tpu_custom_call.1} parent=39 // pred_fallthru
          _
        %v467 = vld [vmem:[#allocation2] sm:$0xff]
        %v468 = vld [vmem:[#allocation2 + $0x8] sm:$0xff]
        %v469 = vld [vmem:[#allocation2 + $0x10] sm:$0xff]
        %v470 = vld [vmem:[#allocation2 + $0x18] sm:$0xff]
        %v471 = vld [vmem:[#allocation2 + $0x20] sm:$0xff]
        %v472 = vld [vmem:[#allocation2 + $0x28] sm:$0xff]
        %v473 = vld [vmem:[#allocation2 + $0x30] sm:$0xff]
        %v474 = vld [vmem:[#allocation2 + $0x38] sm:$0xff]
        %v475 = vld [vmem:[#allocation2 + $0x40] sm:$0xff]
        %v476 = vld [vmem:[#allocation2 + $0x48] sm:$0xff]
        %v477 = vld [vmem:[#allocation2 + $0x50] sm:$0xff]
        %v478 = vld [vmem:[#allocation2 + $0x58] sm:$0xff]
        %v479 = vld [vmem:[#allocation2 + $0x60] sm:$0xff]
        %v480 = vld [vmem:[#allocation2 + $0x68] sm:$0xff]
        %v481 = vld [vmem:[#allocation2 + $0x70] sm:$0xff]
        %v482 = vld [vmem:[#allocation2 + $0x78] sm:$0xff]
        %v483 = vld [vmem:[%s350] sm:$0xf]
        %v484 = vld [vmem:[%s350 + $0x4] sm:$0xf]
        %v485 = vld [vmem:[%s350 + $0x8] sm:$0xf]
        %v486 = vld [vmem:[%s350 + $0xc] sm:$0xf]
        %v487 = vld [vmem:[%s350 + $0x10] sm:$0xf]
        %v488 = vld [vmem:[%s350 + $0x14] sm:$0xf]
        %v489 = vld [vmem:[%s350 + $0x18] sm:$0xf]
        %v490 = vld [vmem:[%s350 + $0x1c] sm:$0xf]
        %v491 = vld [vmem:[%s350 + $0x20] sm:$0xf]
        %v492 = vld [vmem:[%s350 + $0x24] sm:$0xf]
        %v493 = vld [vmem:[%s350 + $0x28] sm:$0xf]
        %v494 = vld [vmem:[%s350 + $0x2c] sm:$0xf]
        %v495 = vld [vmem:[%s350 + $0x30] sm:$0xf]
        %v496 = vld [vmem:[%s350 + $0x34] sm:$0xf]
        %v497 = vld [vmem:[%s350 + $0x38] sm:$0xf]
        %v498 = vld [vmem:[%s350 + $0x3c] sm:$0xf]
        %v499 = vld [vmem:[%s359] sm:$0xf]
        %v500 = vld [vmem:[%s359 + $0x4] sm:$0xf]
        %v501 = vld [vmem:[%s359 + $0x8] sm:$0xf]
        %v502 = vld [vmem:[%s359 + $0xc] sm:$0xf]
        %v503 = vld [vmem:[%s359 + $0x10] sm:$0xf]
        %v504 = vld [vmem:[%s359 + $0x14] sm:$0xf]
        %v505 = vld [vmem:[%s359 + $0x18] sm:$0xf]
        %v506 = vld [vmem:[%s359 + $0x1c] sm:$0xf]
        %v507 = vld [vmem:[%s359 + $0x20] sm:$0xf]
        %v508 = vld [vmem:[%s359 + $0x24] sm:$0xf]
        %v509 = vld [vmem:[%s359 + $0x28] sm:$0xf]
        %v510 = vld [vmem:[%s359 + $0x2c] sm:$0xf]
        %v511 = vld [vmem:[%s359 + $0x30] sm:$0xf]
        %v512 = vld [vmem:[%s359 + $0x34] sm:$0xf]
        %v513 = vld [vmem:[%s359 + $0x38] sm:$0xf]
        %v514 = vld [vmem:[%s359 + $0x3c] sm:$0xf]
        %v531 = vunpack.c.l.b16 %v483
        %v532 = vunpack.c.l.b16 %v484
        %v533 = vunpack.c.l.b16 %v485
        %v534 = vunpack.c.l.b16 %v486
        %v535 = vunpack.c.l.b16 %v487
        %v536 = vunpack.c.l.b16 %v488
        %v537 = vunpack.c.l.b16 %v489
        %v538 = vunpack.c.l.b16 %v490
        %v539 = vunpack.c.l.b16 %v491
        %v540 = vunpack.c.l.b16 %v492
        %v541 = vunpack.c.l.b16 %v493
        %v542 = vunpack.c.l.b16 %v494
        %v543 = vunpack.c.l.b16 %v495
        %v544 = vunpack.c.l.b16 %v496
        %v545 = vunpack.c.l.b16 %v497
        %v546 = vunpack.c.l.b16 %v498
        %v547 = vpack.c.b16 %v532, %v531
        %v548 = vpack.c.b16 %v534, %v533
        %v549 = vpack.c.b16 %v536, %v535
        %v550 = vpack.c.b16 %v538, %v537
        %v551 = vpack.c.b16 %v540, %v539
        %v552 = vpack.c.b16 %v542, %v541
        %v553 = vpack.c.b16 %v544, %v543
        %v554 = vpack.c.b16 %v546, %v545
        %v579 = vunpack.c.l.b16 %v499
        %v580 = vunpack.c.l.b16 %v500
        %v581 = vunpack.c.l.b16 %v501
        %v582 = vunpack.c.l.b16 %v502
        %v583 = vunpack.c.l.b16 %v503
        %v584 = vunpack.c.l.b16 %v504
        %v585 = vunpack.c.l.b16 %v505
        %v586 = vunpack.c.l.b16 %v506
        %v587 = vunpack.c.l.b16 %v507
        %v588 = vunpack.c.l.b16 %v508
        %v589 = vunpack.c.l.b16 %v509
        %v590 = vunpack.c.l.b16 %v510
        %v591 = vunpack.c.l.b16 %v511
        %v592 = vunpack.c.l.b16 %v512
        %v593 = vunpack.c.l.b16 %v513
        %v594 = vunpack.c.l.b16 %v514
        %v595 = vpack.c.b16 %v580, %v579
        %v596 = vpack.c.b16 %v582, %v581
        %v597 = vpack.c.b16 %v584, %v583
        %v598 = vpack.c.b16 %v586, %v585
        %v599 = vpack.c.b16 %v588, %v587
        %v600 = vpack.c.b16 %v590, %v589
        %v601 = vpack.c.b16 %v592, %v591
        %v602 = vpack.c.b16 %v594, %v593
        %611 = vmatprep.subr.bf16.mxu0 0
        %612 = vmatpush1.bf16.xpose.msra.mxu0 %v595
        %613 = vmatprep.subr.bf16.mxu0 0
        %614 = vmatpush1.bf16.xpose.msra.mxu0 %v596
        %615 = vmatprep.subr.bf16.mxu0 0
        %616 = vmatpush1.bf16.xpose.msra.mxu0 %v597
        %617 = vmatprep.subr.bf16.mxu0 0
        %618 = vmatpush1.bf16.xpose.msra.mxu0 %v598
        %619 = vmatprep.subr.bf16.mxu0 0
        %620 = vmatpush1.bf16.xpose.msra.mxu0 %v599
        %621 = vmatprep.subr.bf16.mxu0 0
        %622 = vmatpush1.bf16.xpose.msra.mxu0 %v600
        %623 = vmatprep.subr.bf16.mxu0 0
        %624 = vmatpush1.bf16.xpose.msra.mxu0 %v601
        %625 = vmatprep.subr.bf16.mxu0 0
        %626 = vmatpush1.bf16.xpose.msra.mxu0 %v602
        %627 = vmatprep.subr.bf16.mxu0 0
        %628 = vmatpush1.bf16.xpose.msra.mxu0 0
        %629 = vmatprep.subr.bf16.mxu0 0
        %630 = vmatpush1.bf16.xpose.msra.mxu0 0
        %631 = vmatprep.subr.bf16.mxu0 0
        %632 = vmatpush1.bf16.xpose.msra.mxu0 0
        %633 = vmatprep.subr.bf16.mxu0 0
        %634 = vmatpush1.bf16.xpose.msra.mxu0 0
        %635 = vmatprep.subr.bf16.mxu0 0
        %636 = vmatpush1.bf16.xpose.msra.mxu0 0
        %637 = vmatprep.subr.bf16.mxu0 0
        %638 = vmatpush1.bf16.xpose.msra.mxu0 0
        %639 = vmatprep.subr.bf16.mxu0 0
        %640 = vmatpush1.bf16.xpose.msra.mxu0 0
        %641 = vmatprep.subr.bf16.mxu0 0
        %642 = vmatpush1.bf16.xpose.msra.mxu0 0
        %643 = vmatprep.mubr.bf16.mxu0 0
        %644 = vmatmul.mubr.bf16.gmra.mrb[0].mxu0 %v547
        %v645 = vpop.f32.mrb[0].mxu0
        %v646 = vadd.f32 0.0, %v645
        %v647 = vpop.f32.mrb[0].mxu0
        %v648 = vpop.f32.mrb[0].mxu0
        %v649 = vadd.f32 0.0, %v648
        %v650 = vpop.f32.mrb[0].mxu0
        %651 = vmatprep.mubr.bf16.mxu0 0
        %652 = vmatmul.mubr.bf16.gmra.mrb[0].mxu0 %v548
        %v653 = vpop.f32.mrb[0].mxu0
        %v654 = vadd.f32 0.0, %v653
        %v655 = vpop.f32.mrb[0].mxu0
        %v656 = vpop.f32.mrb[0].mxu0
        %v657 = vadd.f32 0.0, %v656
        %v658 = vpop.f32.mrb[0].mxu0
        %659 = vmatprep.mubr.bf16.mxu0 0
        %660 = vmatmul.mubr.bf16.gmra.mrb[0].mxu0 %v549
        %v661 = vpop.f32.mrb[0].mxu0
        %v662 = vadd.f32 0.0, %v661
        %v663 = vpop.f32.mrb[0].mxu0
        %v664 = vpop.f32.mrb[0].mxu0
        %v665 = vadd.f32 0.0, %v664
        %v666 = vpop.f32.mrb[0].mxu0
        %667 = vmatprep.mubr.bf16.mxu0 0
        %668 = vmatmul.mubr.bf16.gmra.mrb[0].mxu0 %v550
        %v669 = vpop.f32.mrb[0].mxu0
        %v670 = vadd.f32 0.0, %v669
        %v671 = vpop.f32.mrb[0].mxu0
        %v672 = vpop.f32.mrb[0].mxu0
        %v673 = vadd.f32 0.0, %v672
        %v674 = vpop.f32.mrb[0].mxu0
        %675 = vmatprep.mubr.bf16.mxu0 0
        %676 = vmatmul.mubr.bf16.gmra.mrb[0].mxu0 %v551
        %v677 = vpop.f32.mrb[0].mxu0
        %v678 = vadd.f32 0.0, %v677
        %v679 = vpop.f32.mrb[0].mxu0
        %v680 = vpop.f32.mrb[0].mxu0
        %v681 = vadd.f32 0.0, %v680
        %v682 = vpop.f32.mrb[0].mxu0
        %683 = vmatprep.mubr.bf16.mxu0 0
        %684 = vmatmul.mubr.bf16.gmra.mrb[0].mxu0 %v552
        %v685 = vpop.f32.mrb[0].mxu0
        %v686 = vadd.f32 0.0, %v685
        %v687 = vpop.f32.mrb[0].mxu0
        %v688 = vpop.f32.mrb[0].mxu0
        %v689 = vadd.f32 0.0, %v688
        %v690 = vpop.f32.mrb[0].mxu0
        %691 = vmatprep.mubr.bf16.mxu0 0
        %692 = vmatmul.mubr.bf16.gmra.mrb[0].mxu0 %v553
        %v693 = vpop.f32.mrb[0].mxu0
        %v694 = vadd.f32 0.0, %v693
        %v695 = vpop.f32.mrb[0].mxu0
        %v696 = vpop.f32.mrb[0].mxu0
        %v697 = vadd.f32 0.0, %v696
        %v698 = vpop.f32.mrb[0].mxu0
        %699 = vmatprep.mubr.bf16.mxu0 0
        %700 = vmatmul.mubr.bf16.gmra.mrb[0].mxu0 %v554
        %v701 = vpop.f32.mrb[0].mxu0
        %v702 = vadd.f32 0.0, %v701
        %v703 = vpop.f32.mrb[0].mxu0
        %v704 = vpop.f32.mrb[0].mxu0
        %v705 = vadd.f32 0.0, %v704
        %v706 = vpop.f32.mrb[0].mxu0
        %707 = vdwg.mxu0
        %v708 = vadd.f32 %v467, %v646
        %v709 = vadd.f32 %v468, %v649
        %v710 = vadd.f32 %v469, %v654
        %v711 = vadd.f32 %v470, %v657
        %v712 = vadd.f32 %v471, %v662
        %v713 = vadd.f32 %v472, %v665
        %v714 = vadd.f32 %v473, %v670
        %v715 = vadd.f32 %v474, %v673
        %v716 = vadd.f32 %v475, %v678
        %v717 = vadd.f32 %v476, %v681
        %v718 = vadd.f32 %v477, %v686
        %v719 = vadd.f32 %v478, %v689
        %v720 = vadd.f32 %v479, %v694
        %v721 = vadd.f32 %v480, %v697
        %v722 = vadd.f32 %v481, %v702
        %v723 = vadd.f32 %v482, %v705
        %724 = vst [vmem:[#allocation2] sm:$0xff] %v708
        %725 = vst [vmem:[#allocation2 + $0x8] sm:$0xff] %v709
        %726 = vst [vmem:[#allocation2 + $0x10] sm:$0xff] %v710
        %727 = vst [vmem:[#allocation2 + $0x18] sm:$0xff] %v711
        %728 = vst [vmem:[#allocation2 + $0x20] sm:$0xff] %v712
        %729 = vst [vmem:[#allocation2 + $0x28] sm:$0xff] %v713
        %730 = vst [vmem:[#allocation2 + $0x30] sm:$0xff] %v714
        %731 = vst [vmem:[#allocation2 + $0x38] sm:$0xff] %v715
        %732 = vst [vmem:[#allocation2 + $0x40] sm:$0xff] %v716
        %733 = vst [vmem:[#allocation2 + $0x48] sm:$0xff] %v717
        %734 = vst [vmem:[#allocation2 + $0x50] sm:$0xff] %v718
        %735 = vst [vmem:[#allocation2 + $0x58] sm:$0xff] %v719
        %736 = vst [vmem:[#allocation2 + $0x60] sm:$0xff] %v720
        %737 = vst [vmem:[#allocation2 + $0x68] sm:$0xff] %v721
        %738 = vst [vmem:[#allocation2 + $0x70] sm:$0xff] %v722
        %739 = vst [vmem:[#allocation2 + $0x78] sm:$0xff] %v723
        %v740 = vld [vmem:[#allocation3] sm:$0xff]
        %v741 = vld [vmem:[#allocation3 + $0x8] sm:$0xff]
        %v742 = vld [vmem:[#allocation3 + $0x10] sm:$0xff]
        %v743 = vld [vmem:[#allocation3 + $0x18] sm:$0xff]
        %v744 = vld [vmem:[#allocation3 + $0x20] sm:$0xff]
        %v745 = vld [vmem:[#allocation3 + $0x28] sm:$0xff]
        %v746 = vld [vmem:[#allocation3 + $0x30] sm:$0xff]
        %v747 = vld [vmem:[#allocation3 + $0x38] sm:$0xff]
        %v748 = vld [vmem:[#allocation3 + $0x40] sm:$0xff]
        %v749 = vld [vmem:[#allocation3 + $0x48] sm:$0xff]
        %v750 = vld [vmem:[#allocation3 + $0x50] sm:$0xff]
        %v751 = vld [vmem:[#allocation3 + $0x58] sm:$0xff]
        %v752 = vld [vmem:[#allocation3 + $0x60] sm:$0xff]
        %v753 = vld [vmem:[#allocation3 + $0x68] sm:$0xff]
        %v754 = vld [vmem:[#allocation3 + $0x70] sm:$0xff]
        %v755 = vld [vmem:[#allocation3 + $0x78] sm:$0xff]
        %v756 = vld [vmem:[%s350] sm:$0xf]
        %v757 = vld [vmem:[%s350 + $0x4] sm:$0xf]
        %v758 = vld [vmem:[%s350 + $0x8] sm:$0xf]
        %v759 = vld [vmem:[%s350 + $0xc] sm:$0xf]
        %v760 = vld [vmem:[%s350 + $0x10] sm:$0xf]
        %v761 = vld [vmem:[%s350 + $0x14] sm:$0xf]
        %v762 = vld [vmem:[%s350 + $0x18] sm:$0xf]
        %v763 = vld [vmem:[%s350 + $0x1c] sm:$0xf]
        %v764 = vld [vmem:[%s350 + $0x20] sm:$0xf]
        %v765 = vld [vmem:[%s350 + $0x24] sm:$0xf]
        %v766 = vld [vmem:[%s350 + $0x28] sm:$0xf]
        %v767 = vld [vmem:[%s350 + $0x2c] sm:$0xf]
        %v768 = vld [vmem:[%s350 + $0x30] sm:$0xf]
        %v769 = vld [vmem:[%s350 + $0x34] sm:$0xf]
        %v770 = vld [vmem:[%s350 + $0x38] sm:$0xf]
        %v771 = vld [vmem:[%s350 + $0x3c] sm:$0xf]
        %v772 = vld [vmem:[%s368] sm:$0xf]
        %v773 = vld [vmem:[%s368 + $0x4] sm:$0xf]
        %v774 = vld [vmem:[%s368 + $0x8] sm:$0xf]
        %v775 = vld [vmem:[%s368 + $0xc] sm:$0xf]
        %v776 = vld [vmem:[%s368 + $0x10] sm:$0xf]
        %v777 = vld [vmem:[%s368 + $0x14] sm:$0xf]
        %v778 = vld [vmem:[%s368 + $0x18] sm:$0xf]
        %v779 = vld [vmem:[%s368 + $0x1c] sm:$0xf]
        %v780 = vld [vmem:[%s368 + $0x20] sm:$0xf]
        %v781 = vld [vmem:[%s368 + $0x24] sm:$0xf]
        %v782 = vld [vmem:[%s368 + $0x28] sm:$0xf]
        %v783 = vld [vmem:[%s368 + $0x2c] sm:$0xf]
        %v784 = vld [vmem:[%s368 + $0x30] sm:$0xf]
        %v785 = vld [vmem:[%s368 + $0x34] sm:$0xf]
        %v786 = vld [vmem:[%s368 + $0x38] sm:$0xf]
        %v787 = vld [vmem:[%s368 + $0x3c] sm:$0xf]
        %v804 = vunpack.c.l.b16 %v756
        %v805 = vunpack.c.l.b16 %v757
        %v806 = vunpack.c.l.b16 %v758
        %v807 = vunpack.c.l.b16 %v759
        %v808 = vunpack.c.l.b16 %v760
        %v809 = vunpack.c.l.b16 %v761
        %v810 = vunpack.c.l.b16 %v762
        %v811 = vunpack.c.l.b16 %v763
        %v812 = vunpack.c.l.b16 %v764
        %v813 = vunpack.c.l.b16 %v765
        %v814 = vunpack.c.l.b16 %v766
        %v815 = vunpack.c.l.b16 %v767
        %v816 = vunpack.c.l.b16 %v768
        %v817 = vunpack.c.l.b16 %v769
        %v818 = vunpack.c.l.b16 %v770
        %v819 = vunpack.c.l.b16 %v771
        %v820 = vpack.c.b16 %v805, %v804
        %v821 = vpack.c.b16 %v807, %v806
        %v822 = vpack.c.b16 %v809, %v808
        %v823 = vpack.c.b16 %v811, %v810
        %v824 = vpack.c.b16 %v813, %v812
        %v825 = vpack.c.b16 %v815, %v814
        %v826 = vpack.c.b16 %v817, %v816
        %v827 = vpack.c.b16 %v819, %v818
        %v852 = vunpack.c.l.b16 %v772
        %v853 = vunpack.c.l.b16 %v773
        %v854 = vunpack.c.l.b16 %v774
        %v855 = vunpack.c.l.b16 %v775
        %v856 = vunpack.c.l.b16 %v776
        %v857 = vunpack.c.l.b16 %v777
        %v858 = vunpack.c.l.b16 %v778
        %v859 = vunpack.c.l.b16 %v779
        %v860 = vunpack.c.l.b16 %v780
        %v861 = vunpack.c.l.b16 %v781
        %v862 = vunpack.c.l.b16 %v782
        %v863 = vunpack.c.l.b16 %v783
        %v864 = vunpack.c.l.b16 %v784
        %v865 = vunpack.c.l.b16 %v785
        %v866 = vunpack.c.l.b16 %v786
        %v867 = vunpack.c.l.b16 %v787
        %v868 = vpack.c.b16 %v853, %v852
        %v869 = vpack.c.b16 %v855, %v854
        %v870 = vpack.c.b16 %v857, %v856
        %v871 = vpack.c.b16 %v859, %v858
        %v872 = vpack.c.b16 %v861, %v860
        %v873 = vpack.c.b16 %v863, %v862
        %v874 = vpack.c.b16 %v865, %v864
        %v875 = vpack.c.b16 %v867, %v866
        %884 = vmatprep.subr.bf16.mxu0 0
        %885 = vmatpush1.bf16.xpose.msra.mxu0 %v868
        %886 = vmatprep.subr.bf16.mxu0 0
        %887 = vmatpush1.bf16.xpose.msra.mxu0 %v869
        %888 = vmatprep.subr.bf16.mxu0 0
        %889 = vmatpush1.bf16.xpose.msra.mxu0 %v870
        %890 = vmatprep.subr.bf16.mxu0 0
        %891 = vmatpush1.bf16.xpose.msra.mxu0 %v871
        %892 = vmatprep.subr.bf16.mxu0 0
        %893 = vmatpush1.bf16.xpose.msra.mxu0 %v872
        %894 = vmatprep.subr.bf16.mxu0 0
        %895 = vmatpush1.bf16.xpose.msra.mxu0 %v873
        %896 = vmatprep.subr.bf16.mxu0 0
        %897 = vmatpush1.bf16.xpose.msra.mxu0 %v874
        %898 = vmatprep.subr.bf16.mxu0 0
        %899 = vmatpush1.bf16.xpose.msra.mxu0 %v875
        %900 = vmatprep.subr.bf16.mxu0 0
        %901 = vmatpush1.bf16.xpose.msra.mxu0 0
        %902 = vmatprep.subr.bf16.mxu0 0
        %903 = vmatpush1.bf16.xpose.msra.mxu0 0
        %904 = vmatprep.subr.bf16.mxu0 0
        %905 = vmatpush1.bf16.xpose.msra.mxu0 0
        %906 = vmatprep.subr.bf16.mxu0 0
        %907 = vmatpush1.bf16.xpose.msra.mxu0 0
        %908 = vmatprep.subr.bf16.mxu0 0
        %909 = vmatpush1.bf16.xpose.msra.mxu0 0
        %910 = vmatprep.subr.bf16.mxu0 0
        %911 = vmatpush1.bf16.xpose.msra.mxu0 0
        %912 = vmatprep.subr.bf16.mxu0 0
        %913 = vmatpush1.bf16.xpose.msra.mxu0 0
        %914 = vmatprep.subr.bf16.mxu0 0
        %915 = vmatpush1.bf16.xpose.msra.mxu0 0
        %916 = vmatprep.mubr.bf16.mxu0 0
        %917 = vmatmul.mubr.bf16.gmra.mrb[0].mxu0 %v820
        %v918 = vpop.f32.mrb[0].mxu0
        %v919 = vadd.f32 0.0, %v918
        %v920 = vpop.f32.mrb[0].mxu0
        %v921 = vpop.f32.mrb[0].mxu0
        %v922 = vadd.f32 0.0, %v921
        %v923 = vpop.f32.mrb[0].mxu0
        %924 = vmatprep.mubr.bf16.mxu0 0
        %925 = vmatmul.mubr.bf16.gmra.mrb[0].mxu0 %v821
        %v926 = vpop.f32.mrb[0].mxu0
        %v927 = vadd.f32 0.0, %v926
        %v928 = vpop.f32.mrb[0].mxu0
        %v929 = vpop.f32.mrb[0].mxu0
        %v930 = vadd.f32 0.0, %v929
        %v931 = vpop.f32.mrb[0].mxu0
        %932 = vmatprep.mubr.bf16.mxu0 0
        %933 = vmatmul.mubr.bf16.gmra.mrb[0].mxu0 %v822
        %v934 = vpop.f32.mrb[0].mxu0
        %v935 = vadd.f32 0.0, %v934
        %v936 = vpop.f32.mrb[0].mxu0
        %v937 = vpop.f32.mrb[0].mxu0
        %v938 = vadd.f32 0.0, %v937
        %v939 = vpop.f32.mrb[0].mxu0
        %940 = vmatprep.mubr.bf16.mxu0 0
        %941 = vmatmul.mubr.bf16.gmra.mrb[0].mxu0 %v823
        %v942 = vpop.f32.mrb[0].mxu0
        %v943 = vadd.f32 0.0, %v942
        %v944 = vpop.f32.mrb[0].mxu0
        %v945 = vpop.f32.mrb[0].mxu0
        %v946 = vadd.f32 0.0, %v945
        %v947 = vpop.f32.mrb[0].mxu0
        %948 = vmatprep.mubr.bf16.mxu0 0
        %949 = vmatmul.mubr.bf16.gmra.mrb[0].mxu0 %v824
        %v950 = vpop.f32.mrb[0].mxu0
        %v951 = vadd.f32 0.0, %v950
        %v952 = vpop.f32.mrb[0].mxu0
        %v953 = vpop.f32.mrb[0].mxu0
        %v954 = vadd.f32 0.0, %v953
        %v955 = vpop.f32.mrb[0].mxu0
        %956 = vmatprep.mubr.bf16.mxu0 0
        %957 = vmatmul.mubr.bf16.gmra.mrb[0].mxu0 %v825
        %v958 = vpop.f32.mrb[0].mxu0
        %v959 = vadd.f32 0.0, %v958
        %v960 = vpop.f32.mrb[0].mxu0
        %v961 = vpop.f32.mrb[0].mxu0
        %v962 = vadd.f32 0.0, %v961
        %v963 = vpop.f32.mrb[0].mxu0
        %964 = vmatprep.mubr.bf16.mxu0 0
        %965 = vmatmul.mubr.bf16.gmra.mrb[0].mxu0 %v826
        %v966 = vpop.f32.mrb[0].mxu0
        %v967 = vadd.f32 0.0, %v966
        %v968 = vpop.f32.mrb[0].mxu0
        %v969 = vpop.f32.mrb[0].mxu0
        %v970 = vadd.f32 0.0, %v969
        %v971 = vpop.f32.mrb[0].mxu0
        %972 = vmatprep.mubr.bf16.mxu0 0
        %973 = vmatmul.mubr.bf16.gmra.mrb[0].mxu0 %v827
        %v974 = vpop.f32.mrb[0].mxu0
        %v975 = vadd.f32 0.0, %v974
        %v976 = vpop.f32.mrb[0].mxu0
        %v977 = vpop.f32.mrb[0].mxu0
        %v978 = vadd.f32 0.0, %v977
        %v979 = vpop.f32.mrb[0].mxu0
        %980 = vdwg.mxu0
        %v981 = vadd.f32 %v740, %v919
        %v982 = vadd.f32 %v741, %v922
        %v983 = vadd.f32 %v742, %v927
        %v984 = vadd.f32 %v743, %v930
        %v985 = vadd.f32 %v744, %v935
        %v986 = vadd.f32 %v745, %v938
        %v987 = vadd.f32 %v746, %v943
        %v988 = vadd.f32 %v747, %v946
        %v989 = vadd.f32 %v748, %v951
        %v990 = vadd.f32 %v749, %v954
        %v991 = vadd.f32 %v750, %v959
        %v992 = vadd.f32 %v751, %v962
        %v993 = vadd.f32 %v752, %v967
        %v994 = vadd.f32 %v753, %v970
        %v995 = vadd.f32 %v754, %v975
        %v996 = vadd.f32 %v755, %v978
        %997 = vst [vmem:[#allocation3] sm:$0xff] %v981
        %998 = vst [vmem:[#allocation3 + $0x8] sm:$0xff] %v982
        %999 = vst [vmem:[#allocation3 + $0x10] sm:$0xff] %v983
        %1000 = vst [vmem:[#allocation3 + $0x18] sm:$0xff] %v984
        %1001 = vst [vmem:[#allocation3 + $0x20] sm:$0xff] %v985
        %1002 = vst [vmem:[#allocation3 + $0x28] sm:$0xff] %v986
        %1003 = vst [vmem:[#allocation3 + $0x30] sm:$0xff] %v987
        %1004 = vst [vmem:[#allocation3 + $0x38] sm:$0xff] %v988
        %1005 = vst [vmem:[#allocation3 + $0x40] sm:$0xff] %v989
        %1006 = vst [vmem:[#allocation3 + $0x48] sm:$0xff] %v990
        %1007 = vst [vmem:[#allocation3 + $0x50] sm:$0xff] %v991
        %1008 = vst [vmem:[#allocation3 + $0x58] sm:$0xff] %v992
        %1009 = vst [vmem:[#allocation3 + $0x60] sm:$0xff] %v993
        %1010 = vst [vmem:[#allocation3 + $0x68] sm:$0xff] %v994
        %1011 = vst [vmem:[#allocation3 + $0x70] sm:$0xff] %v995
        %1012 = vst [vmem:[#allocation3 + $0x78] sm:$0xff] %v996
        %p1013 = scmp.eq.s32.totalorder %s37, 1
        // Predicated region
        $region57: #{tpu_custom_call.1} parent=39 // pred_check
          %p1014 = pneg %p1013
        $region58: #{tpu_custom_call.1} parent=39 // pred_check_branch
          %1016 = sbr.rel (%p1014) target = $region60
        $region59: #{tpu_custom_call.1} parent=39 // pred_region
          %v1017 = vld [vmem:[#allocation2] sm:$0xff]
          %v1018 = vld [vmem:[#allocation2 + $0x8] sm:$0xff]
          %v1019 = vld [vmem:[#allocation2 + $0x10] sm:$0xff]
          %v1020 = vld [vmem:[#allocation2 + $0x18] sm:$0xff]
          %v1021 = vld [vmem:[#allocation2 + $0x20] sm:$0xff]
          %v1022 = vld [vmem:[#allocation2 + $0x28] sm:$0xff]
          %v1023 = vld [vmem:[#allocation2 + $0x30] sm:$0xff]
          %v1024 = vld [vmem:[#allocation2 + $0x38] sm:$0xff]
          %v1025 = vld [vmem:[#allocation2 + $0x40] sm:$0xff]
          %v1026 = vld [vmem:[#allocation2 + $0x48] sm:$0xff]
          %v1027 = vld [vmem:[#allocation2 + $0x50] sm:$0xff]
          %v1028 = vld [vmem:[#allocation2 + $0x58] sm:$0xff]
          %v1029 = vld [vmem:[#allocation2 + $0x60] sm:$0xff]
          %v1030 = vld [vmem:[#allocation2 + $0x68] sm:$0xff]
          %v1031 = vld [vmem:[#allocation2 + $0x70] sm:$0xff]
          %v1032 = vld [vmem:[#allocation2 + $0x78] sm:$0xff]
          %v1033 = vld [vmem:[%s424] sm:$0x1]
          %v1035 = vlaneseq
          %v1036 = vshrl.u32 %v1035, 7
          %v1037 = vsub.s32 0, %v1036
          %v1038 = vrot.slane %v1033, %v1037
          %v1040 = vadd.f32 %v1017, %v1038
          %v1041 = vadd.f32 %v1018, %v1038
          %v1042 = vadd.f32 %v1019, %v1038
          %v1043 = vadd.f32 %v1020, %v1038
          %v1044 = vadd.f32 %v1021, %v1038
          %v1045 = vadd.f32 %v1022, %v1038
          %v1046 = vadd.f32 %v1023, %v1038
          %v1047 = vadd.f32 %v1024, %v1038
          %v1048 = vadd.f32 %v1025, %v1038
          %v1049 = vadd.f32 %v1026, %v1038
          %v1050 = vadd.f32 %v1027, %v1038
          %v1051 = vadd.f32 %v1028, %v1038
          %v1052 = vadd.f32 %v1029, %v1038
          %v1053 = vadd.f32 %v1030, %v1038
          %v1054 = vadd.f32 %v1031, %v1038
          %v1055 = vadd.f32 %v1032, %v1038
          %v1056 = vpack.c.bf16 %v1041, %v1040
          %v1057 = vpack.c.bf16 %v1043, %v1042
          %v1058 = vpack.c.bf16 %v1045, %v1044
          %v1059 = vpack.c.bf16 %v1047, %v1046
          %v1060 = vpack.c.bf16 %v1049, %v1048
          %v1061 = vpack.c.bf16 %v1051, %v1050
          %v1062 = vpack.c.bf16 %v1053, %v1052
          %v1063 = vpack.c.bf16 %v1055, %v1054
          %v1072 = vunpack.c.l.b16 %v1056
          %v1073 = vunpack.c.h.b16 %v1056
          %v1074 = vunpack.c.l.b16 %v1057
          %v1075 = vunpack.c.h.b16 %v1057
          %v1076 = vunpack.c.l.b16 %v1058
          %v1077 = vunpack.c.h.b16 %v1058
          %v1078 = vunpack.c.l.b16 %v1059
          %v1079 = vunpack.c.h.b16 %v1059
          %v1080 = vunpack.c.l.b16 %v1060
          %v1081 = vunpack.c.h.b16 %v1060
          %v1082 = vunpack.c.l.b16 %v1061
          %v1083 = vunpack.c.h.b16 %v1061
          %v1084 = vunpack.c.l.b16 %v1062
          %v1085 = vunpack.c.h.b16 %v1062
          %v1086 = vunpack.c.l.b16 %v1063
          %v1087 = vunpack.c.h.b16 %v1063
          %v1088 = vpack.c.b16 %v1072, %v1072
          %v1089 = vpack.c.b16 %v1073, %v1073
          %v1090 = vpack.c.b16 %v1074, %v1074
          %v1091 = vpack.c.b16 %v1075, %v1075
          %v1092 = vpack.c.b16 %v1076, %v1076
          %v1093 = vpack.c.b16 %v1077, %v1077
          %v1094 = vpack.c.b16 %v1078, %v1078
          %v1095 = vpack.c.b16 %v1079, %v1079
          %v1096 = vpack.c.b16 %v1080, %v1080
          %v1097 = vpack.c.b16 %v1081, %v1081
          %v1098 = vpack.c.b16 %v1082, %v1082
          %v1099 = vpack.c.b16 %v1083, %v1083
          %v1100 = vpack.c.b16 %v1084, %v1084
          %v1101 = vpack.c.b16 %v1085, %v1085
          %v1102 = vpack.c.b16 %v1086, %v1086
          %v1103 = vpack.c.b16 %v1087, %v1087
          %1120 = vst [vmem:[%s410] sm:$0xf] %v1088
          %1121 = vst [vmem:[%s410 + $0x4] sm:$0xf] %v1089
          %1122 = vst [vmem:[%s410 + $0x8] sm:$0xf] %v1090
          %1123 = vst [vmem:[%s410 + $0xc] sm:$0xf] %v1091
          %1124 = vst [vmem:[%s410 + $0x10] sm:$0xf] %v1092
          %1125 = vst [vmem:[%s410 + $0x14] sm:$0xf] %v1093
          %1126 = vst [vmem:[%s410 + $0x18] sm:$0xf] %v1094
          %1127 = vst [vmem:[%s410 + $0x1c] sm:$0xf] %v1095
          %1128 = vst [vmem:[%s410 + $0x20] sm:$0xf] %v1096
          %1129 = vst [vmem:[%s410 + $0x24] sm:$0xf] %v1097
          %1130 = vst [vmem:[%s410 + $0x28] sm:$0xf] %v1098
          %1131 = vst [vmem:[%s410 + $0x2c] sm:$0xf] %v1099
          %1132 = vst [vmem:[%s410 + $0x30] sm:$0xf] %v1100
          %1133 = vst [vmem:[%s410 + $0x34] sm:$0xf] %v1101
          %1134 = vst [vmem:[%s410 + $0x38] sm:$0xf] %v1102
          %1135 = vst [vmem:[%s410 + $0x3c] sm:$0xf] %v1103
          %v1136 = vld [vmem:[#allocation3] sm:$0xff]
          %v1137 = vld [vmem:[#allocation3 + $0x8] sm:$0xff]
          %v1138 = vld [vmem:[#allocation3 + $0x10] sm:$0xff]
          %v1139 = vld [vmem:[#allocation3 + $0x18] sm:$0xff]
          %v1140 = vld [vmem:[#allocation3 + $0x20] sm:$0xff]
          %v1141 = vld [vmem:[#allocation3 + $0x28] sm:$0xff]
          %v1142 = vld [vmem:[#allocation3 + $0x30] sm:$0xff]
          %v1143 = vld [vmem:[#allocation3 + $0x38] sm:$0xff]
          %v1144 = vld [vmem:[#allocation3 + $0x40] sm:$0xff]
          %v1145 = vld [vmem:[#allocation3 + $0x48] sm:$0xff]
          %v1146 = vld [vmem:[#allocation3 + $0x50] sm:$0xff]
          %v1147 = vld [vmem:[#allocation3 + $0x58] sm:$0xff]
          %v1148 = vld [vmem:[#allocation3 + $0x60] sm:$0xff]
          %v1149 = vld [vmem:[#allocation3 + $0x68] sm:$0xff]
          %v1150 = vld [vmem:[#allocation3 + $0x70] sm:$0xff]
          %v1151 = vld [vmem:[#allocation3 + $0x78] sm:$0xff]
          %v1152 = vld [vmem:[%s427] sm:$0x1]
          %v1154 = vlaneseq
          %v1155 = vshrl.u32 %v1154, 7
          %v1156 = vsub.s32 0, %v1155
          %v1157 = vrot.slane %v1152, %v1156
          %v1159 = vadd.f32 %v1136, %v1157
          %v1160 = vadd.f32 %v1137, %v1157
          %v1161 = vadd.f32 %v1138, %v1157
          %v1162 = vadd.f32 %v1139, %v1157
          %v1163 = vadd.f32 %v1140, %v1157
          %v1164 = vadd.f32 %v1141, %v1157
          %v1165 = vadd.f32 %v1142, %v1157
          %v1166 = vadd.f32 %v1143, %v1157
          %v1167 = vadd.f32 %v1144, %v1157
          %v1168 = vadd.f32 %v1145, %v1157
          %v1169 = vadd.f32 %v1146, %v1157
          %v1170 = vadd.f32 %v1147, %v1157
          %v1171 = vadd.f32 %v1148, %v1157
          %v1172 = vadd.f32 %v1149, %v1157
          %v1173 = vadd.f32 %v1150, %v1157
          %v1174 = vadd.f32 %v1151, %v1157
          %v1175 = vpack.c.bf16 %v1160, %v1159
          %v1176 = vpack.c.bf16 %v1162, %v1161
          %v1177 = vpack.c.bf16 %v1164, %v1163
          %v1178 = vpack.c.bf16 %v1166, %v1165
          %v1179 = vpack.c.bf16 %v1168, %v1167
          %v1180 = vpack.c.bf16 %v1170, %v1169
          %v1181 = vpack.c.bf16 %v1172, %v1171
          %v1182 = vpack.c.bf16 %v1174, %v1173
          %v1191 = vunpack.c.l.b16 %v1175
          %v1192 = vunpack.c.h.b16 %v1175
          %v1193 = vunpack.c.l.b16 %v1176
          %v1194 = vunpack.c.h.b16 %v1176
          %v1195 = vunpack.c.l.b16 %v1177
          %v1196 = vunpack.c.h.b16 %v1177
          %v1197 = vunpack.c.l.b16 %v1178
          %v1198 = vunpack.c.h.b16 %v1178
          %v1199 = vunpack.c.l.b16 %v1179
          %v1200 = vunpack.c.h.b16 %v1179
          %v1201 = vunpack.c.l.b16 %v1180
          %v1202 = vunpack.c.h.b16 %v1180
          %v1203 = vunpack.c.l.b16 %v1181
          %v1204 = vunpack.c.h.b16 %v1181
          %v1205 = vunpack.c.l.b16 %v1182
          %v1206 = vunpack.c.h.b16 %v1182
          %v1207 = vpack.c.b16 %v1191, %v1191
          %v1208 = vpack.c.b16 %v1192, %v1192
          %v1209 = vpack.c.b16 %v1193, %v1193
          %v1210 = vpack.c.b16 %v1194, %v1194
          %v1211 = vpack.c.b16 %v1195, %v1195
          %v1212 = vpack.c.b16 %v1196, %v1196
          %v1213 = vpack.c.b16 %v1197, %v1197
          %v1214 = vpack.c.b16 %v1198, %v1198
          %v1215 = vpack.c.b16 %v1199, %v1199
          %v1216 = vpack.c.b16 %v1200, %v1200
          %v1217 = vpack.c.b16 %v1201, %v1201
          %v1218 = vpack.c.b16 %v1202, %v1202
          %v1219 = vpack.c.b16 %v1203, %v1203
          %v1220 = vpack.c.b16 %v1204, %v1204
          %v1221 = vpack.c.b16 %v1205, %v1205
          %v1222 = vpack.c.b16 %v1206, %v1206
          %1239 = vst [vmem:[%s417] sm:$0xf] %v1207
          %1240 = vst [vmem:[%s417 + $0x4] sm:$0xf] %v1208
          %1241 = vst [vmem:[%s417 + $0x8] sm:$0xf] %v1209
          %1242 = vst [vmem:[%s417 + $0xc] sm:$0xf] %v1210
          %1243 = vst [vmem:[%s417 + $0x10] sm:$0xf] %v1211
          %1244 = vst [vmem:[%s417 + $0x14] sm:$0xf] %v1212
          %1245 = vst [vmem:[%s417 + $0x18] sm:$0xf] %v1213
          %1246 = vst [vmem:[%s417 + $0x1c] sm:$0xf] %v1214
          %1247 = vst [vmem:[%s417 + $0x20] sm:$0xf] %v1215
          %1248 = vst [vmem:[%s417 + $0x24] sm:$0xf] %v1216
          %1249 = vst [vmem:[%s417 + $0x28] sm:$0xf] %v1217
          %1250 = vst [vmem:[%s417 + $0x2c] sm:$0xf] %v1218
          %1251 = vst [vmem:[%s417 + $0x30] sm:$0xf] %v1219
          %1252 = vst [vmem:[%s417 + $0x34] sm:$0xf] %v1220
          %1253 = vst [vmem:[%s417 + $0x38] sm:$0xf] %v1221
          %1254 = vst [vmem:[%s417 + $0x3c] sm:$0xf] %v1222
        $region60: #{tpu_custom_call.1} parent=39 // pred_fallthru
          _
        %s1255 = sand.u32 %s197, 1
        %s1256 = scalar_lea.sflag [#allocation6], %s1255
        %s1257 = sand.u32 %s197, 1
        %s1258 = smul.addr %s1257, 64
        %s1259 = scalar_lea.vmem [#allocation10], %s1258
        %s1260 = sand.u32 %s225, 1
        %s1261 = scalar_lea.sflag [#allocation12], %s1260
        %s1262 = sand.u32 %s225, 1
        %s1263 = smul.addr %s1262, 64
        %s1264 = scalar_lea.vmem [#allocation11], %s1263
        // Predicated region
        $region61: #{tpu_custom_call.1} parent=39 // pred_check
          %p1265 = pneg %p207
        $region62: #{tpu_custom_call.1} parent=39 // pred_check_branch
          %1267 = sbr.rel (%p1265) target = $region64
        $region63: #{tpu_custom_call.1} parent=39 // pred_region
          %s1268 = smul.u32 16, %s35
          %s1270 = ssub.s32 1024, 1024
          %1271 = vsyncadd %s1256, %s1270
          %s1272 = smul.addr %s1268, 2
          %s1273 = sadd.s32 %s36, %s1272
          %s1274 = smul.addr %s1273, 64
          %s1275 = scalar_lea.hbm %s5, %s1274
          %s1276 = sshll.u32 %s1259, 4
          %s1277 = int_to_ptr.vmem [resolvable:$true] %s1276
          %1282 = dma.vmem_to_hbm [thread:$0]  %s1277, 1024, %s1275, %s1256, 64, 128, 4
        $region64: #{tpu_custom_call.1} parent=39 // pred_fallthru
          _
        // Predicated region
        $region65: #{tpu_custom_call.1} parent=39 // pred_check
          %p1283 = pneg %p235
        $region66: #{tpu_custom_call.1} parent=39 // pred_check_branch
          %1285 = sbr.rel (%p1283) target = $region68
        $region67: #{tpu_custom_call.1} parent=39 // pred_region
          %s1286 = smul.u32 16, %s35
          %s1288 = ssub.s32 1024, 1024
          %1289 = vsyncadd %s1261, %s1288
          %s1290 = smul.addr %s1286, 2
          %s1291 = sadd.s32 %s36, %s1290
          %s1292 = smul.addr %s1291, 64
          %s1293 = scalar_lea.hbm %s6, %s1292
          %s1294 = sshll.u32 %s1264, 4
          %s1295 = int_to_ptr.vmem [resolvable:$true] %s1294
          %1300 = dma.vmem_to_hbm [thread:$0]  %s1295, 1024, %s1293, %s1261, 64, 128, 4
        $region68: #{tpu_custom_call.1} parent=39 // pred_fallthru
          _
      $region40: #{tpu_custom_call.1} parent=5 // pred_fallthru
        _
      %p1301 = scmp.le.s32.totalorder 2, %s25
      // Predicated region
      $region69: #{tpu_custom_call.1} parent=5 // pred_check
        %p1302 = pneg %p1301
      $region70: #{tpu_custom_call.1} parent=5 // pred_check_branch
        %1304 = sbr.rel (%p1302) target = $region72
      $region71: #{tpu_custom_call.1} parent=5 // pred_region
        %s1305 = ssub.s32 %s25, 2
        // Predicated region
        $region73: #{tpu_custom_call.1} parent=71 // pred_check
          %p1306 = pneg %p213
        $region74: #{tpu_custom_call.1} parent=71 // pred_check_branch
          %1308 = sbr.rel (%p1306) target = $region76
        $region75: #{tpu_custom_call.1} parent=71 // pred_region
          %s1309 = sand.u32 %s198, 1
          %s1310 = scalar_lea.sflag [#allocation6], %s1309
          %s1311 = sand.u32 %s198, 1
          %s1312 = smul.addr %s1311, 64
          %s1313 = scalar_lea.vmem [#allocation10], %s1312
          %1314 = dma.done %s1310, 1024
        $region76: #{tpu_custom_call.1} parent=71 // pred_fallthru
          _
        // Predicated region
        $region77: #{tpu_custom_call.1} parent=71 // pred_check
          %p1315 = pneg %p241
        $region78: #{tpu_custom_call.1} parent=71 // pred_check_branch
          %1317 = sbr.rel (%p1315) target = $region80
        $region79: #{tpu_custom_call.1} parent=71 // pred_region
          %s1318 = sand.u32 %s226, 1
          %s1319 = scalar_lea.sflag [#allocation12], %s1318
          %s1320 = sand.u32 %s226, 1
          %s1321 = smul.addr %s1320, 64
          %s1322 = scalar_lea.vmem [#allocation11], %s1321
          %1323 = dma.done %s1319, 1024
        $region80: #{tpu_custom_call.1} parent=71 // pred_fallthru
          _
      $region72: #{tpu_custom_call.1} parent=5 // pred_fallthru
        _
    $region6: #{tpu_custom_call.1} parent=1 // loop_footer
      %s29 = sadd.s32 1, %s25
    $region7: #{tpu_custom_call.1} parent=1 // loop_footer_branch
      %24 = sbr.rel target = $region3
    $region8: #{tpu_custom_call.1} parent=1 // loop_exit
      _
    %1324 = vsyncpa [#allocation5], 1
    %s1325 = scalar_lea.sflag [#allocation5], 1
    %1326 = vsyncpa %s1325, 1
    %1327 = vsyncpa [#allocation8], 1
    %s1328 = scalar_lea.sflag [#allocation8], 1
    %1329 = vsyncpa %s1328, 1
    %1330 = vsyncpa [#allocation6], 1
    %s1331 = scalar_lea.sflag [#allocation6], 1
    %1332 = vsyncpa %s1331, 1
    %1333 = vsyncpa [#allocation12], 1
    %s1334 = scalar_lea.sflag [#allocation12], 1
    %1335 = vsyncpa %s1334, 1

</llo_original>
